<compile_context>
chip_gen: v7x
topology: tpu7x:2x2x1
jax: 0.10.0
libtpu: 0.0.40
codegen_flags: <defaults>
</compile_context>

<pallas_src>
import jax
import jax.numpy as jnp
from jax.experimental import pallas as pl
from jax.experimental.pallas import tpu as pltpu

HALF = jnp.bfloat16  # TPU half precision


def _round_up(x, m):
    return ((x + m - 1) // m) * m


def _choose_tile(dim, pref, align):
    """Pick a tile <= pref (multiple of `align`) for a dim already rounded to `align`.

    Prefers a tile that divides `dim` exactly (caps padding waste at zero); falls back
    to `pref` (padding of at most one sub-tile) if no divisor exists.
    """
    if dim <= pref:
        return dim  # resident: single block along this axis
    t = (pref // align) * align
    while t >= align:
        if dim % t == 0:
            return t
        t -= align
    return (pref // align) * align


# ---------------------------------------------------------------------------
# Kernels
# ---------------------------------------------------------------------------
def _linear_bias_kernel(x_ref, w_ref, b_ref, o_ref):
    """K-resident path: one MXU dot (f32 accumulation) + bias per (tm, tn) tile."""
    acc = jnp.dot(x_ref[...], w_ref[...], preferred_element_type=jnp.float32)
    o_ref[...] = (acc + b_ref[...].astype(jnp.float32)).astype(o_ref.dtype)


def _linear_bias_acc_kernel(x_ref, w_ref, b_ref, o_ref, acc_ref):
    """K-tiled path: f32 VMEM accumulator, bias folded into the k==0 init."""
    k = pl.program_id(2)

    @pl.when(k == 0)
    def _():
        acc_ref[...] = jnp.broadcast_to(
            b_ref[...].astype(jnp.float32), acc_ref.shape
        )

    acc_ref[...] += jnp.dot(
        x_ref[...], w_ref[...], preferred_element_type=jnp.float32
    )

    @pl.when(k == pl.num_programs(2) - 1)
    def _():
        o_ref[...] = acc_ref[...].astype(o_ref.dtype)


# ---------------------------------------------------------------------------
# Wrapper
# ---------------------------------------------------------------------------
def half_precision_linear(
    x, w_t, b, *, tm_pref=512, tn_pref=512, tk_pref=1024, k_resident_max=2048
):
    """y = x_bf16 @ w_t + b, returned in bf16.

    x   : (M, K)  bf16 (f32 is cast once here if needed)
    w_t : (K, N)  bf16 (torch Linear weight pre-transposed to (in, out))
    b   : (1, N)  bf16
    """
    if x.dtype != HALF:
        x = x.astype(HALF)  # one-time pre-cast (mirrors torch .half())
    M, K = x.shape
    K2, N = w_t.shape
    assert K == K2 and b.shape == (1, N)

    # Rounded dims: lane dims 128-aligned, sublane dim 16-aligned (bf16 packing).
    Mr = _round_up(M, 16)
    Kr = _round_up(K, 128)
    Nr = _round_up(N, 128)

    # Tile selection (divisor-friendly; resident when the dim fits one tile).
    tm = _choose_tile(Mr, tm_pref, 16)
    tn = _choose_tile(Nr, tn_pref, 128)
    if Kr <= k_resident_max:
        tk = Kr  # K resident: no reduction grid axis, no accumulator scratch
    else:
        tk = _choose_tile(Kr, min(tk_pref, k_resident_max), 128)

    # v7x megacore: make sure the parallel (i, j) grid has >= 2 tiles when possible.
    if Mr <= tm and Nr <= tn and Nr >= 256:
        tn = _round_up((Nr + 1) // 2, 128)

    Mp, Kp, Np = _round_up(Mr, tm), _round_up(Kr, tk), _round_up(Nr, tn)

    # Zero-pad to tile multiples (padded K contributes 0; padded M/N sliced off).
    if (Mp, Kp) != (M, K):
        x = jnp.pad(x, ((0, Mp - M), (0, Kp - K)))
    if (Kp, Np) != (K, N):
        w_t = jnp.pad(w_t, ((0, Kp - K), (0, Np - N)))
    if Np != N:
        b = jnp.pad(b, ((0, 0), (0, Np - N)))

    grid_m, grid_n, grid_k = Mp // tm, Np // tn, Kp // tk

    # Real HBM traffic: x re-read once per N tile, weights once per M tile.
    cost = pl.CostEstimate(
        flops=2 * Mp * Np * Kp,
        transcendentals=0,
        bytes_accessed=(
            grid_n * Mp * Kp * 2    # x (bf16), re-read per N tile
            + grid_m * Kp * Np * 2  # weights (bf16), re-read per M tile
            + grid_m * Np * 2       # bias (bf16)
            + Mp * Np * 2           # output (bf16)
        ),
    )

    # Double-buffered bf16 blocks (+ f32 accumulator when K is tiled).
    vmem_need = 2 * (tm * tk + tk * tn + tn + tm * tn) * 2
    if grid_k > 1:
        vmem_need += tm * tn * 4
    vmem_limit = min(max(2 * vmem_need, 32 << 20), 48 << 20)

    if grid_k == 1:
        kernel = _linear_bias_kernel
        grid = (grid_m, grid_n)
        in_specs = [
            pl.BlockSpec((tm, tk), lambda i, j: (i, 0)),
            pl.BlockSpec((tk, tn), lambda i, j: (0, j)),
            pl.BlockSpec((1, tn), lambda i, j: (0, j)),
        ]
        out_specs = pl.BlockSpec((tm, tn), lambda i, j: (i, j))
        scratch = []
        dims = ("parallel", "parallel")
    else:
        kernel = _linear_bias_acc_kernel
        grid = (grid_m, grid_n, grid_k)
        in_specs = [
            pl.BlockSpec((tm, tk), lambda i, j, k: (i, k)),
            pl.BlockSpec((tk, tn), lambda i, j, k: (k, j)),
            pl.BlockSpec((1, tn), lambda i, j, k: (0, j)),
        ]
        out_specs = pl.BlockSpec((tm, tn), lambda i, j, k: (i, j))
        scratch = [pltpu.VMEM((tm, tn), jnp.float32)]
        dims = ("parallel", "parallel", "arbitrary")

    out = pl.pallas_call(
        kernel,
        out_shape=jax.ShapeDtypeStruct((Mp, Np), HALF),
        grid_spec=pltpu.PrefetchScalarGridSpec(
            num_scalar_prefetch=0,
            grid=grid,
            in_specs=in_specs,
            out_specs=out_specs,
            scratch_shapes=scratch,
        ),
        compiler_params=pltpu.CompilerParams(
            dimension_semantics=dims,
            vmem_limit_bytes=vmem_limit,
        ),
        cost_estimate=cost,
    )(x, w_t, b)

    if (Mp, Np) != (M, N):
        out = out[:M, :N]
    return out


class HalfPrecisionLayer:
    """JAX mirror of the PyTorch HalfPrecisionLayer wrapping nn.Linear(hidden, hidden)."""

    def __init__(self, name, hidden, key):
        self._name = name + "_fp16"
        kw, kb = jax.random.split(key)
        # torch.nn.Linear default init: U(-1/sqrt(in), 1/sqrt(in)); weight shape (out, in)
        bound = 1.0 / (hidden ** 0.5)
        w = jax.random.uniform(kw, (hidden, hidden), jnp.float32, -bound, bound)
        b = jax.random.uniform(kb, (hidden,), jnp.float32, -bound, bound)
        # __init__ does layer.half(): params stored in half precision
        self.w_t = jnp.transpose(w).astype(HALF)       # (in, out)
        self.b = b.astype(HALF).reshape(1, hidden)     # (1, out)

    def __call__(self, *args, **kwargs):
        # Mirror of the PyTorch wrapper's cast loop: float32 tensors are cast once to
        # half precision before running the wrapped Linear.
        processed_args = []
        for arg in args:
            if isinstance(arg, jax.Array) and arg.dtype == jnp.float32:
                processed_args.append(arg.astype(HALF))   # "WARNING: cast!"
            else:
                processed_args.append(arg)
        processed_kwargs = {}
        for key, val in kwargs.items():
            if isinstance(val, jax.Array) and val.dtype == jnp.float32:
                processed_kwargs[key] = val.astype(HALF)  # "WARNING: cast!"
            else:
                processed_kwargs[key] = val
        (x,) = processed_args
        return half_precision_linear(x, self.w_t, self.b)


if __name__ == "__main__":
    key = jax.random.PRNGKey(0)
    k_x, k_layer, k_x2, k_w2, k_b2 = jax.random.split(key, 5)

    # --- Test 1: module-shaped tiny case (batch=2, seq=8, hidden=32) ------------------
    batch, seq, hidden = 2, 8, 32
    x = jax.random.normal(k_x, (batch * seq, hidden), jnp.float32)
    layer = HalfPrecisionLayer("dense", hidden, k_layer)
    y = jax.block_until_ready(layer(x))
    assert y.shape == (batch * seq, hidden)
    assert y.dtype == HALF
    ref = (
        x.astype(HALF).astype(jnp.float32) @ layer.w_t.astype(jnp.float32)
        + layer.b.astype(jnp.float32)
    )
    assert jnp.allclose(y.astype(jnp.float32), ref, atol=5e-2, rtol=5e-2)

    # --- Test 2: exercise the K-tiled accumulator path (forced via k_resident_max) ----
    M2, K2, N2 = 64, 256, 256
    x2 = jax.random.normal(k_x2, (M2, K2), jnp.float32).astype(HALF)
    w2 = (jax.random.uniform(k_w2, (K2, N2), jnp.float32, -0.0625, 0.0625)).astype(HALF)
    b2 = (jax.random.uniform(k_b2, (1, N2), jnp.float32, -0.0625, 0.0625)).astype(HALF)
    y2 = jax.block_until_ready(
        half_precision_linear(x2, w2, b2, k_resident_max=128)
    )
    ref2 = x2.astype(jnp.float32) @ w2.astype(jnp.float32) + b2.astype(jnp.float32)
    assert y2.shape == (M2, N2) and y2.dtype == HALF
    assert jnp.allclose(y2.astype(jnp.float32), ref2, atol=1e-1, rtol=2e-2)

    print("KERNEL_OK")
</pallas_src>

<mosaic_0001>
module attributes {stable_mosaic.version = 11 : i64} {
  func.func @_linear_bias_kernel(%arg0: i32, %arg1: i32, %arg2: memref<16x128xbf16, #tpu.memory_space<vmem>>, %arg3: memref<128x128xbf16, #tpu.memory_space<vmem>>, %arg4: memref<1x128xbf16, #tpu.memory_space<vmem>>, %arg5: memref<16x128xbf16, #tpu.memory_space<vmem>>) attributes {dimension_semantics = [#tpu.dimension_semantics<parallel>, #tpu.dimension_semantics<parallel>], iteration_bounds = array<i64: 1, 1>, scalar_prefetch = 0 : i64, scratch_operands = 0 : i64, tpu.core_type = #tpu.core_type<tc>, window_params = [{transform_indices = @transform_0, window_bounds = array<i64: 16, 128>}, {transform_indices = @transform_1, window_bounds = array<i64: 128, 128>}, {transform_indices = @transform_2, window_bounds = array<i64: 1, 128>}, {transform_indices = @transform_3, window_bounds = array<i64: 16, 128>}]} {
    %c0 = arith.constant 0 : index
    %c0_0 = arith.constant 0 : index
    %0 = vector.load %arg2[%c0, %c0_0] : memref<16x128xbf16, #tpu.memory_space<vmem>>, vector<16x128xbf16>
    %c0_1 = arith.constant 0 : index
    %c0_2 = arith.constant 0 : index
    %1 = vector.load %arg3[%c0_1, %c0_2] : memref<128x128xbf16, #tpu.memory_space<vmem>>, vector<128x128xbf16>
    %cst = arith.constant dense<0.000000e+00> : vector<16x128xf32>
    %2 = tpu.matmul %0, %1, %cst {dimension_numbers = #tpu.dot_dimension_numbers<[1], [0], [0], [1], [0, 0, 1, 1], [], []>} : vector<16x128xbf16>, vector<128x128xbf16>, vector<16x128xf32> -> vector<16x128xf32>
    %c0_3 = arith.constant 0 : index
    %c0_4 = arith.constant 0 : index
    %3 = vector.load %arg4[%c0_3, %c0_4] : memref<1x128xbf16, #tpu.memory_space<vmem>>, vector<1x128xbf16>
    %4 = arith.extf %3 : vector<1x128xbf16> to vector<1x128xf32>
    %5 = vector.broadcast %4 : vector<1x128xf32> to vector<16x128xf32>
    %6 = arith.addf %2, %5 : vector<16x128xf32>
    %7 = arith.truncf %6 : vector<16x128xf32> to vector<16x128xbf16>
    %c0_5 = arith.constant 0 : index
    %c0_6 = arith.constant 0 : index
    %8 = vector.load %arg5[%c0_5, %c0_6] : memref<16x128xbf16, #tpu.memory_space<vmem>>, vector<16x128xbf16>
    tpu.vector_store %arg5[%c0_5, %c0_6], %7 {strides = array<i32>} : memref<16x128xbf16, #tpu.memory_space<vmem>>, vector<16x128xbf16>,
    return
  }
  func.func @transform_0(%arg0: i32, %arg1: i32) -> (i32, i32) {
    %c0_i32 = arith.constant 0 : i32
    %c0_i32_0 = arith.constant 0 : i32
    return %arg0, %c0_i32 : i32, i32
  }
  func.func @transform_1(%arg0: i32, %arg1: i32) -> (i32, i32) {
    %c0_i32 = arith.constant 0 : i32
    %c0_i32_0 = arith.constant 0 : i32
    return %c0_i32, %arg1 : i32, i32
  }
  func.func @transform_2(%arg0: i32, %arg1: i32) -> (i32, i32) {
    %c0_i32 = arith.constant 0 : i32
    %c0_i32_0 = arith.constant 0 : i32
    return %c0_i32, %arg1 : i32, i32
  }
  func.func @transform_3(%arg0: i32, %arg1: i32) -> (i32, i32) {
    %c0_i32 = arith.constant 0 : i32
    return %arg0, %arg1 : i32, i32
  }
}

</mosaic_0001>

<llo_original>
// kernel: tpu_custom_call.1
$region0: #{tpu_custom_call.1}
  #allocation0 [shape = 'u32[]', space=smem, size = 0x4, offset = 0x4, fixed_abs, tag = 'smem constant byte address 0x4 - core index']
  #allocation1 [shape = 'u32[144,128]{1,0:T(1,128)}', space=vmem, size = 0x12000, scoped, tag = 'internal scratch']
  %s0 = inlined_call_operand.hbm [shape: bf16[16,128], index: 0, kind: input, shape index: {}]
  %s1 = inlined_call_operand.hbm [shape: bf16[128,128], index: 1, kind: input, shape index: {}]
  %s2 = inlined_call_operand.vmem [shape: bf16[1,128], index: 2, kind: input, shape index: {}]
  %s3 = inlined_call_operand.hbm [shape: bf16[16,128], index: 3, kind: output, shape index: {}]
  %s4 = sld [smem:[#allocation0]]
  $region30: #{tpu_custom_call.1} parent=0
    _
  %s6 = ssub.s32 1, %s4
  %s7 = scalar_select 0, %s6, %s4
  $region1: #{tpu_custom_call.1} parent=0
    #allocation2 [shape = 'u8[4096]{0}', space=vmem, size = 0x1000, scoped, tag = 'input window, operand 0, single buffered']
    #allocation3 [shape = 's32[1]{0}', space=sflag, size = 0x4, scoped, tag = 'scoped memory for tpu_custom_call.1']
    #allocation4 [shape = 's32[1]{0}', space=sflag, size = 0x4, scoped, tag = 'scoped memory for tpu_custom_call.1']
    #allocation5 [shape = 'u8[32768]{0}', space=vmem, size = 0x8000, scoped, tag = 'input window, operand 1, single buffered']
    #allocation6 [shape = 's32[1]{0}', space=sflag, size = 0x4, scoped, tag = 'scoped memory for tpu_custom_call.1']
    #allocation7 [shape = 'u8[4096]{0}', space=vmem, size = 0x1000, scoped, tag = 'output window, operand 0, single buffered']
    %8 = vsyncpa [#allocation3], 0
    %9 = vsyncpa [#allocation6], 0
    %10 = vsyncpa [#allocation4], 0
    // Predicated region
    $region2: #{tpu_custom_call.1} parent=1 // pred_check
      _
    $region3: #{tpu_custom_call.1} parent=1 // pred_check_branch
      %12 = sbr.rel (0) target = $region5
    $region4: #{tpu_custom_call.1} parent=1 // pred_region
      %s14 = ssub.s32 128, 128
      %15 = vsyncadd [#allocation3], %s14
      %s16 = sshll.u32 [#allocation2], 4
      %s17 = int_to_ptr.vmem [resolvable:$true] %s16
      %22 = dma.hbm_to_vmem [thread:$0]  %s0, 128, %s17, [#allocation3], 64, 64, 4
    $region5: #{tpu_custom_call.1} parent=1 // pred_fallthru
      _
    // Predicated region
    $region6: #{tpu_custom_call.1} parent=1 // pred_check
      _
    $region7: #{tpu_custom_call.1} parent=1 // pred_check_branch
      %24 = sbr.rel (0) target = $region9
    $region8: #{tpu_custom_call.1} parent=1 // pred_region
      %s26 = ssub.s32 1024, 1024
      %27 = vsyncadd [#allocation6], %s26
      %s28 = sshll.u32 [#allocation5], 4
      %s29 = int_to_ptr.vmem [resolvable:$true] %s28
      %34 = dma.hbm_to_vmem [thread:$0]  %s1, 1024, %s29, [#allocation6], 64, 64, 4
    $region9: #{tpu_custom_call.1} parent=1 // pred_fallthru
      _
    // Predicated region
    $region10: #{tpu_custom_call.1} parent=1 // pred_check
      _
    $region11: #{tpu_custom_call.1} parent=1 // pred_check_branch
      %36 = sbr.rel (0) target = $region13
    $region12: #{tpu_custom_call.1} parent=1 // pred_region
      _
    $region13: #{tpu_custom_call.1} parent=1 // pred_fallthru
      _
    // Predicated region
    $region14: #{tpu_custom_call.1} parent=1 // pred_check
      _
    $region15: #{tpu_custom_call.1} parent=1 // pred_check_branch
      %38 = sbr.rel (0) target = $region17
    $region16: #{tpu_custom_call.1} parent=1 // pred_region
      %39 = dma.done [#allocation3], 128
    $region17: #{tpu_custom_call.1} parent=1 // pred_fallthru
      _
    // Predicated region
    $region18: #{tpu_custom_call.1} parent=1 // pred_check
      _
    $region19: #{tpu_custom_call.1} parent=1 // pred_check_branch
      %41 = sbr.rel (0) target = $region21
    $region20: #{tpu_custom_call.1} parent=1 // pred_region
      %42 = dma.done [#allocation6], 1024
    $region21: #{tpu_custom_call.1} parent=1 // pred_fallthru
      _
    %v44 = vld [vmem:[#allocation2] sm:$0xf]
    %v45 = vld [vmem:[#allocation2 + $0x4] sm:$0xf]
    %v46 = vld [vmem:[#allocation5] sm:$0xf]
    %v47 = vld [vmem:[#allocation5 + $0x4] sm:$0xf]
    %v48 = vld [vmem:[#allocation5 + $0x8] sm:$0xf]
    %v49 = vld [vmem:[#allocation5 + $0xc] sm:$0xf]
    %v50 = vld [vmem:[#allocation5 + $0x10] sm:$0xf]
    %v51 = vld [vmem:[#allocation5 + $0x14] sm:$0xf]
    %v52 = vld [vmem:[#allocation5 + $0x18] sm:$0xf]
    %v53 = vld [vmem:[#allocation5 + $0x1c] sm:$0xf]
    %v54 = vld [vmem:[#allocation5 + $0x20] sm:$0xf]
    %v55 = vld [vmem:[#allocation5 + $0x24] sm:$0xf]
    %v56 = vld [vmem:[#allocation5 + $0x28] sm:$0xf]
    %v57 = vld [vmem:[#allocation5 + $0x2c] sm:$0xf]
    %v58 = vld [vmem:[#allocation5 + $0x30] sm:$0xf]
    %v59 = vld [vmem:[#allocation5 + $0x34] sm:$0xf]
    %v60 = vld [vmem:[#allocation5 + $0x38] sm:$0xf]
    %v61 = vld [vmem:[#allocation5 + $0x3c] sm:$0xf]
    %v62 = vld [vmem:[%s2] sm:$0x1]
    %v63 = vunpack.c.l.bf16 %v62
    %v64 = vlaneseq
    %v65 = vshrl.u32 %v64, 7
    %v66 = vsub.s32 0, %v65
    %v67 = vrot.slane %v63, %v66
    %v70 = vunpack.c.l.b16 %v44
    %v71 = vunpack.c.l.b16 %v45
    %v72 = vpack.c.b16 %v71, %v70
    %v90 = vunpack.c.l.b16 %v46
    %v91 = vunpack.c.l.b16 %v47
    %v92 = vunpack.c.l.b16 %v48
    %v93 = vunpack.c.l.b16 %v49
    %v94 = vunpack.c.l.b16 %v50
    %v95 = vunpack.c.l.b16 %v51
    %v96 = vunpack.c.l.b16 %v52
    %v97 = vunpack.c.l.b16 %v53
    %v98 = vunpack.c.l.b16 %v54
    %v99 = vunpack.c.l.b16 %v55
    %v100 = vunpack.c.l.b16 %v56
    %v101 = vunpack.c.l.b16 %v57
    %v102 = vunpack.c.l.b16 %v58
    %v103 = vunpack.c.l.b16 %v59
    %v104 = vunpack.c.l.b16 %v60
    %v105 = vunpack.c.l.b16 %v61
    %v106 = vpack.c.b16 %v91, %v90
    %v107 = vpack.c.b16 %v93, %v92
    %v108 = vpack.c.b16 %v95, %v94
    %v109 = vpack.c.b16 %v97, %v96
    %v110 = vpack.c.b16 %v99, %v98
    %v111 = vpack.c.b16 %v101, %v100
    %v112 = vpack.c.b16 %v103, %v102
    %v113 = vpack.c.b16 %v105, %v104
    %122 = vmatprep.subr.bf16.mxu0 0
    %123 = vmatpush1.bf16.msra.mxu0 %v106
    %124 = vmatprep.subr.bf16.mxu0 0
    %125 = vmatpush1.bf16.msra.mxu0 %v107
    %126 = vmatprep.subr.bf16.mxu0 0
    %127 = vmatpush1.bf16.msra.mxu0 %v108
    %128 = vmatprep.subr.bf16.mxu0 0
    %129 = vmatpush1.bf16.msra.mxu0 %v109
    %130 = vmatprep.subr.bf16.mxu0 0
    %131 = vmatpush1.bf16.msra.mxu0 %v110
    %132 = vmatprep.subr.bf16.mxu0 0
    %133 = vmatpush1.bf16.msra.mxu0 %v111
    %134 = vmatprep.subr.bf16.mxu0 0
    %135 = vmatpush1.bf16.msra.mxu0 %v112
    %136 = vmatprep.subr.bf16.mxu0 0
    %137 = vmatpush1.bf16.msra.mxu0 %v113
    %138 = vmatprep.subr.bf16.mxu0 0
    %139 = vmatpush1.bf16.msra.mxu0 0
    %140 = vmatprep.subr.bf16.mxu0 0
    %141 = vmatpush1.bf16.msra.mxu0 0
    %142 = vmatprep.subr.bf16.mxu0 0
    %143 = vmatpush1.bf16.msra.mxu0 0
    %144 = vmatprep.subr.bf16.mxu0 0
    %145 = vmatpush1.bf16.msra.mxu0 0
    %146 = vmatprep.subr.bf16.mxu0 0
    %147 = vmatpush1.bf16.msra.mxu0 0
    %148 = vmatprep.subr.bf16.mxu0 0
    %149 = vmatpush1.bf16.msra.mxu0 0
    %150 = vmatprep.subr.bf16.mxu0 0
    %151 = vmatpush1.bf16.msra.mxu0 0
    %152 = vmatprep.subr.bf16.mxu0 0
    %153 = vmatpush1.bf16.msra.mxu0 0
    %154 = vmatprep.mubr.bf16.mxu0 0
    %155 = vmatmul.mubr.bf16.gmra.mrb[0].mxu0 %v72
    %v156 = vpop.f32.mrb[0].mxu0
    %v157 = vadd.f32 %v67, %v156
    %v158 = vpop.f32.mrb[0].mxu0
    %v159 = vpop.f32.mrb[0].mxu0
    %v160 = vadd.f32 %v67, %v159
    %v161 = vpop.f32.mrb[0].mxu0
    %162 = vdwg.mxu0
    %v163 = vpack.c.bf16 %v160, %v157
    %v165 = vunpack.c.l.b16 %v163
    %v166 = vunpack.c.h.b16 %v163
    %v167 = vpack.c.b16 %v165, %v165
    %v168 = vpack.c.b16 %v166, %v166
    %171 = vst [vmem:[#allocation7] sm:$0xf] %v167
    %172 = vst [vmem:[#allocation7 + $0x4] sm:$0xf] %v168
    // Predicated region
    $region22: #{tpu_custom_call.1} parent=1 // pred_check
      _
    $region23: #{tpu_custom_call.1} parent=1 // pred_check_branch
      %174 = sbr.rel (0) target = $region25
    $region24: #{tpu_custom_call.1} parent=1 // pred_region
      %s176 = ssub.s32 128, 128
      %177 = vsyncadd [#allocation4], %s176
      %s178 = sshll.u32 [#allocation7], 4
      %s179 = int_to_ptr.vmem [resolvable:$true] %s178
      %184 = dma.vmem_to_hbm [thread:$0]  %s179, 128, %s3, [#allocation4], 64, 64, 4
    $region25: #{tpu_custom_call.1} parent=1 // pred_fallthru
      _
    // Predicated region
    $region26: #{tpu_custom_call.1} parent=1 // pred_check
      _
    $region27: #{tpu_custom_call.1} parent=1 // pred_check_branch
      %186 = sbr.rel (0) target = $region29
    $region28: #{tpu_custom_call.1} parent=1 // pred_region
      %187 = dma.done [#allocation4], 128
    $region29: #{tpu_custom_call.1} parent=1 // pred_fallthru
      _
    %188 = vsyncpa [#allocation3], 1
    %189 = vsyncpa [#allocation6], 1
    %190 = vsyncpa [#allocation4], 1

</llo_original>
